<compile_context>
chip_gen: v7x
topology: tpu7x:2x2x1
jax: 0.10.0
libtpu: 0.0.40
codegen_flags: <defaults>
</compile_context>

<pallas_src>
import functools
import math

import jax
import jax.numpy as jnp
from jax import lax
from jax.experimental import pallas as pl
from jax.experimental.pallas import tpu as pltpu


# ----------------------------- Pallas kernels ------------------------------

def _weights_kernel(inv_t2_ref, logits_ref, u_ref, w_ref):
    """Gumbel-softmax selector weights in (K, D) layout (softmax over last axis)."""
    inv_t2 = inv_t2_ref[0]                      # 1 / temp**2 : folds both divides
    # Clamp u away from 1 so -log(-log(u)) stays finite.
    u = jnp.clip(u_ref[...], 1e-6, 1.0 - 1e-6)
    # Fused: (logits + gumbel)/temp/temp == (logits - log(-log(u))) * inv_t2
    scaled = (logits_ref[...] - jnp.log(-jnp.log(u))) * inv_t2
    # Numerically-stable softmax over the lane (D) axis.
    m = jnp.max(scaled, axis=-1, keepdims=True)
    e = jnp.exp(scaled - m)
    s = jnp.sum(e, axis=-1, keepdims=True)
    # exact reciprocal: approx=True drifts ~1e-3 and normalization must match ref
    w_ref[...] = (e * pl.reciprocal(s, approx=False)).astype(w_ref.dtype)


def _select_matmul_kernel(x_ref, wt_ref, out_ref, *, use_bf16):
    """One batch tile: out = x_tile @ w.T, with w supplied as (K, D) (contract D)."""
    x = x_ref[...]
    w = wt_ref[...]
    if use_bf16:
        # bf16 MXU inputs, f32 accumulation. (Full HBM savings additionally require
        # x to be stored bf16 upstream; the cast here is free VPU work either way.)
        x = x.astype(jnp.bfloat16)
        w = w.astype(jnp.bfloat16)
    out_ref[...] = lax.dot_general(
        x, w,
        dimension_numbers=(((1,), (1,)), ((), ())),   # contract over D
        preferred_element_type=jnp.float32,
    ).astype(out_ref.dtype)


# ------------------------------ Python wrapper ------------------------------

def current_temp(epoch, num_epochs, start_temp, min_temp, sched_type="exponential"):
    if sched_type == "exponential":
        return max(min_temp, start_temp * (min_temp / start_temp) ** (epoch / num_epochs))
    if sched_type == "linear":
        return max(min_temp, start_temp - (start_temp - min_temp) * (epoch / num_epochs))
    if sched_type == "cosine":
        return min_temp + 0.5 * (start_temp - min_temp) * (
            1.0 + math.cos(epoch * math.pi / num_epochs)
        )
    raise ValueError(sched_type)


def _pick_tile_n(n, d):
    """Batch tile sized so the double-buffered x tiles stay well inside the scoped
    VMEM limit on every generation (v7x has only 64 MiB physical / 32 MiB scoped)."""
    budget = 8 * 1024 * 1024                      # bytes for the two x input buffers
    t = max(8, min(1024, budget // (2 * d * 4)))
    t = (t // 8) * 8
    return n if n <= t else t


def select_layer_forward_train(x, logits, uniform, temp, *, use_bf16_matmul=True):
    """x: (N, D) f32, logits/uniform: (D, K) f32, temp: python float.

    Returns (x @ weights (N, K), weights (D, K)) matching the PyTorch module."""
    N, D = x.shape
    D2, K = logits.shape
    assert D == D2 and uniform.shape == (D, K)

    inv_t2 = jnp.full((1,), 1.0 / (float(temp) * float(temp)), dtype=jnp.float32)

    # Lane-dense layout for the elementwise/gumbel/softmax phase: D on the lane axis.
    logits_t = logits.T        # (K, D)
    uniform_t = uniform.T      # (K, D)

    vmem = pl.BlockSpec(memory_space=pltpu.MemorySpace.VMEM)
    smem = pl.BlockSpec(memory_space=pltpu.MemorySpace.SMEM)

    # --- kernel A: gumbel-softmax weights, computed exactly once ------------
    w_t = pl.pallas_call(
        _weights_kernel,
        out_shape=jax.ShapeDtypeStruct((K, D), jnp.float32),
        in_specs=[smem, vmem, vmem],
        out_specs=vmem,
        cost_estimate=pl.CostEstimate(
            flops=6 * D * K, transcendentals=3 * D * K,
            bytes_accessed=4 * 3 * D * K),
    )(inv_t2, logits_t, uniform_t)

    # --- kernel B: batch-tiled, pipelined x @ w (contract over D) -----------
    tile_n = _pick_tile_n(N, D)
    grid = (pl.cdiv(N, tile_n),)
    kernel = functools.partial(_select_matmul_kernel, use_bf16=use_bf16_matmul)
    x_sel = pl.pallas_call(
        kernel,
        out_shape=jax.ShapeDtypeStruct((N, K), jnp.float32),
        grid_spec=pltpu.PrefetchScalarGridSpec(
            num_scalar_prefetch=0,
            grid=grid,
            in_specs=[
                pl.BlockSpec((tile_n, D), lambda i: (i, 0)),   # streamed over batch
                pl.BlockSpec((K, D), lambda i: (0, 0)),        # weights resident
            ],
            out_specs=pl.BlockSpec((tile_n, K), lambda i: (i, 0)),
        ),
        compiler_params=pltpu.CompilerParams(
            dimension_semantics=("parallel",),                 # shard batch over TCs
            vmem_limit_bytes=32 * 1024 * 1024,
        ),
        cost_estimate=pl.CostEstimate(
            flops=2 * N * D * K, transcendentals=0,
            bytes_accessed=4 * (N * D + K * D + N * K)),
    )(x, w_t)

    return x_sel, w_t.T    # weights back in the module's (D, K) layout


def select_layer_forward_eval(x, logits):
    """Eval mode: weights = one_hot(argmax(logits, dim=0), D); x_sel = x @ weights.T."""
    N, D = x.shape
    _, K = logits.shape
    idx = jnp.argmax(logits, axis=0)                      # (K,); first-max tie-break, as torch
    weights = jax.nn.one_hot(idx, D, dtype=jnp.float32)   # (K, D), matches F.one_hot(...).float()
    # x @ one_hot(idx).T is just a K-column gather of x; avoid the dense one-hot
    # matmul and its (D, K) DMA entirely (perf review).
    # TODO(synk): the data-dependent lane gather stays in the wrapper; a Pallas
    # scalar-prefetch column-DMA kernel is not worth it for K columns.
    x_sel = jnp.take(x, idx, axis=1)
    return x_sel, weights


# ---------------------------------- main ------------------------------------

if __name__ == "__main__":
    # cfg-equivalent hyperparameters (small shapes)
    input_dim = 64
    k_selected = 8
    num_epochs = 100
    start_temp = 10.0
    min_temp = 0.1
    batch = 16
    epoch = 5

    key = jax.random.PRNGKey(0)
    kx, ku = jax.random.split(key)

    x = jax.random.normal(kx, (batch, input_dim), dtype=jnp.float32)
    # Module init: logits = zeros(input_features, output_features)
    logits = jnp.zeros((input_dim, k_selected), dtype=jnp.float32)
    # Uniform(1e-6, 1.0) samples for the Gumbel noise (deterministic via PRNGKey(0)).
    uniform = jax.random.uniform(
        ku, (input_dim, k_selected), minval=1e-6, maxval=1.0, dtype=jnp.float32
    )

    temp = current_temp(epoch, num_epochs, start_temp, min_temp, "exponential")

    # --- training-mode forward (hot path fully in Pallas) ---
    x_sel, weights = select_layer_forward_train(x, logits, uniform, temp)
    jax.block_until_ready((x_sel, weights))

    # pure-JAX reference check (same clamp and same 1/temp^2 scaling as the kernel)
    inv_t2 = jnp.float32(1.0 / (temp * temp))
    u_c = jnp.clip(uniform, 1e-6, 1.0 - 1e-6)
    gumbel = -jnp.log(-jnp.log(u_c))
    w_ref = jax.nn.softmax((logits + gumbel) * inv_t2, axis=0)
    x_ref = x @ w_ref
    assert jnp.allclose(weights, w_ref, rtol=1e-4, atol=1e-5)
    # bf16 MXU inputs with f32 accumulation -> loosened tolerance on the matmul
    assert jnp.allclose(x_sel, x_ref, rtol=1e-2, atol=1e-2)

    # --- eval-mode forward (argmax/one-hot gather in wrapper, per perf review) ---
    x_eval, w_eval = select_layer_forward_eval(x, logits)
    jax.block_until_ready((x_eval, w_eval))
    assert x_eval.shape == (batch, k_selected) and w_eval.shape == (k_selected, input_dim)
    assert jnp.allclose(x_eval, x @ w_eval.T, rtol=1e-5, atol=1e-6)

    print("KERNEL_OK")
</pallas_src>

<mosaic_0001>
module attributes {stable_mosaic.version = 11 : i64} {
  func.func @_weights_kernel(%arg0: memref<1xf32, #tpu.memory_space<smem>>, %arg1: memref<8x64xf32, #tpu.memory_space<vmem>>, %arg2: memref<8x64xf32, #tpu.memory_space<vmem>>, %arg3: memref<8x64xf32, #tpu.memory_space<vmem>>) attributes {dimension_semantics = [], scalar_prefetch = 0 : i64, scratch_operands = 0 : i64, tpu.core_type = #tpu.core_type<tc>} {
    %c0 = arith.constant 0 : index
    %0 = memref.load %arg0[%c0] : memref<1xf32, #tpu.memory_space<smem>>
    %c0_0 = arith.constant 0 : index
    %c0_1 = arith.constant 0 : index
    %1 = vector.load %arg2[%c0_0, %c0_1] : memref<8x64xf32, #tpu.memory_space<vmem>>, vector<8x64xf32>
    %cst = arith.constant 9.99999997E-7 : f32
    %cst_2 = arith.constant 0.999998986 : f32
    %2 = vector.broadcast %cst : f32 to vector<8x64xf32>
    %3 = arith.maximumf %2, %1 : vector<8x64xf32>
    %4 = vector.broadcast %cst_2 : f32 to vector<8x64xf32>
    %5 = arith.minimumf %4, %3 : vector<8x64xf32>
    %c0_3 = arith.constant 0 : index
    %c0_4 = arith.constant 0 : index
    %6 = vector.load %arg1[%c0_3, %c0_4] : memref<8x64xf32, #tpu.memory_space<vmem>>, vector<8x64xf32>
    %7 = math.log %5 : vector<8x64xf32>
    %cst_5 = arith.constant 0.000000e+00 : f32
    %8 = vector.broadcast %cst_5 : f32 to vector<8x64xf32>
    %9 = arith.subf %8, %7 : vector<8x64xf32>
    %10 = math.log %9 : vector<8x64xf32>
    %11 = arith.subf %6, %10 : vector<8x64xf32>
    %12 = vector.broadcast %0 : f32 to vector<8x64xf32>
    %13 = arith.mulf %11, %12 : vector<8x64xf32>
    %cst_6 = arith.constant dense<0xFF800000> : vector<8xf32>
    %14 = vector.multi_reduction <maximumf>, %13, %cst_6 [1] : vector<8x64xf32> to vector<8xf32>
    %15 = vector.shape_cast %14 : vector<8xf32> to vector<8x1xf32>
    %16 = vector.broadcast %15 : vector<8x1xf32> to vector<8x64xf32>
    %17 = arith.subf %13, %16 : vector<8x64xf32>
    %18 = math.exp %17 : vector<8x64xf32>
    %cst_7 = arith.constant dense<0.000000e+00> : vector<8xf32>
    %19 = vector.multi_reduction <add>, %18, %cst_7 [1] : vector<8x64xf32> to vector<8xf32>
    %20 = vector.shape_cast %19 : vector<8xf32> to vector<8x1xf32>
    %21 = tpu.reciprocal %20 : vector<8x1xf32> -> vector<8x1xf32>
    %22 = vector.broadcast %21 : vector<8x1xf32> to vector<8x64xf32>
    %23 = arith.mulf %18, %22 : vector<8x64xf32>
    %c0_8 = arith.constant 0 : index
    %c0_9 = arith.constant 0 : index
    %24 = vector.load %arg3[%c0_8, %c0_9] : memref<8x64xf32, #tpu.memory_space<vmem>>, vector<8x64xf32>
    tpu.vector_store %arg3[%c0_8, %c0_9], %23 {strides = array<i32>} : memref<8x64xf32, #tpu.memory_space<vmem>>, vector<8x64xf32>,
    return
  }
}

</mosaic_0001>

<llo_original>
// kernel: tpu_custom_call.1
$region0: #{tpu_custom_call.1}
  #allocation0 [shape = 'u32[]', space=smem, size = 0x4, offset = 0x4, fixed_abs, tag = 'smem constant byte address 0x4 - core index']
  #allocation1 [shape = 'u32[144,128]{1,0:T(1,128)}', space=vmem, size = 0x12000, scoped, tag = 'internal scratch']
  #allocation2 [shape = 'f32[1]{0:T(128)S(6)}', space=smem, size = 0x200, scoped, tag = 'scoped memory for tpu_custom_call.1']
  %s0 = inlined_call_operand.<no memory space> [shape: f32[1], index: 0, kind: input, shape index: {}]
  %s1 = inlined_call_operand.hbm [shape: f32[8,64], index: 1, kind: input, shape index: {}]
  %s2 = inlined_call_operand.hbm [shape: f32[8,64], index: 2, kind: input, shape index: {}]
  %s3 = inlined_call_operand.hbm [shape: f32[8,64], index: 3, kind: output, shape index: {}]
  %s4 = sld [smem:[#allocation0]]
  $region30: #{tpu_custom_call.1} parent=0
    _
  %s6 = ssub.s32 1, %s4
  %s7 = scalar_select 0, %s6, %s4
  %8 = sst [smem:[#allocation2]] %s0
  $region1: #{tpu_custom_call.1} parent=0
    #allocation3 [shape = 'u8[4096]{0}', space=vmem, size = 0x1000, scoped, tag = 'input window, operand 1, single buffered']
    #allocation4 [shape = 's32[1]{0}', space=sflag, size = 0x4, scoped, tag = 'scoped memory for tpu_custom_call.1']
    #allocation5 [shape = 's32[1]{0}', space=sflag, size = 0x4, scoped, tag = 'scoped memory for tpu_custom_call.1']
    #allocation6 [shape = 'u8[4096]{0}', space=vmem, size = 0x1000, scoped, tag = 'input window, operand 2, single buffered']
    #allocation7 [shape = 's32[1]{0}', space=sflag, size = 0x4, scoped, tag = 'scoped memory for tpu_custom_call.1']
    #allocation8 [shape = 'u8[4096]{0}', space=vmem, size = 0x1000, scoped, tag = 'output window, operand 0, single buffered']
    %9 = vsyncpa [#allocation4], 0
    %10 = vsyncpa [#allocation7], 0
    %11 = vsyncpa [#allocation5], 0
    // Predicated region
    $region2: #{tpu_custom_call.1} parent=1 // pred_check
      _
    $region3: #{tpu_custom_call.1} parent=1 // pred_check_branch
      %13 = sbr.rel (0) target = $region5
    $region4: #{tpu_custom_call.1} parent=1 // pred_region
      _
    $region5: #{tpu_custom_call.1} parent=1 // pred_fallthru
      _
    // Predicated region
    $region6: #{tpu_custom_call.1} parent=1 // pred_check
      _
    $region7: #{tpu_custom_call.1} parent=1 // pred_check_branch
      %15 = sbr.rel (0) target = $region9
    $region8: #{tpu_custom_call.1} parent=1 // pred_region
      %s17 = ssub.s32 128, 128
      %18 = vsyncadd [#allocation4], %s17
      %s20 = sshll.u32 [#allocation3], 4
      %s21 = int_to_ptr.vmem [resolvable:$true] %s20
      %23 = dma.hbm_to_vmem [thread:$0]  %s1, 128, %s21, [#allocation4]
    $region9: #{tpu_custom_call.1} parent=1 // pred_fallthru
      _
    // Predicated region
    $region10: #{tpu_custom_call.1} parent=1 // pred_check
      _
    $region11: #{tpu_custom_call.1} parent=1 // pred_check_branch
      %25 = sbr.rel (0) target = $region13
    $region12: #{tpu_custom_call.1} parent=1 // pred_region
      %s27 = ssub.s32 128, 128
      %28 = vsyncadd [#allocation7], %s27
      %s30 = sshll.u32 [#allocation6], 4
      %s31 = int_to_ptr.vmem [resolvable:$true] %s30
      %33 = dma.hbm_to_vmem [thread:$0]  %s2, 128, %s31, [#allocation7]
    $region13: #{tpu_custom_call.1} parent=1 // pred_fallthru
      _
    // Predicated region
    $region14: #{tpu_custom_call.1} parent=1 // pred_check
      _
    $region15: #{tpu_custom_call.1} parent=1 // pred_check_branch
      %35 = sbr.rel (0) target = $region17
    $region16: #{tpu_custom_call.1} parent=1 // pred_region
      %36 = dma.done [#allocation4], 128
    $region17: #{tpu_custom_call.1} parent=1 // pred_fallthru
      _
    // Predicated region
    $region18: #{tpu_custom_call.1} parent=1 // pred_check
      _
    $region19: #{tpu_custom_call.1} parent=1 // pred_check_branch
      %38 = sbr.rel (0) target = $region21
    $region20: #{tpu_custom_call.1} parent=1 // pred_region
      %39 = dma.done [#allocation7], 128
    $region21: #{tpu_custom_call.1} parent=1 // pred_fallthru
      _
    %s40 = sld [smem:[#allocation2]]
    %v41 = vld [vmem:[#allocation6] sm:$0xff]
    %v42 = vmax.f32 %v41, 1e-06
    %v43 = vmin.f32 %v42, 0.999999
    %v44 = vld [vmem:[#allocation3] sm:$0xff]
    %v45 = vlog2.pop %v43
    %v46 = vmul.f32 %v45, 0.6931472
    %v47 = vsub.f32 0.0, %v46
    %v48 = vlog2.pop %v47
    %v49 = vmul.f32 %v48, 0.6931472
    %v50 = vsub.f32 %v44, %v49
    %v51 = vstv %s40
    %v52 = vmul.f32 %v50, %v51
    %vm53 = vcmask 523264
    %v54 = vsel %vm53, %v52, -inf
    %55 = vmax.xlane.f32.xlu0 %v54
    %v56 = vpop.xlane.xlu0 %55
    %v57 = vsub.f32 %v52, %v56
    %v58 = vmul.f32 %v57, 1.442695
    %v59 = vpow.pop %v58
    %v60 = vsel %vm53, %v59, 0.0
    %61 = vadd.xlane.f32.xlu0 %v60
    %v62 = vpop.xlane.xlu0 %61
    %v63 = vrcp.pop %v62
    %v64 = vmul.f32 %v59, %v63
    %65 = vst.msk [vmem:[#allocation8] sm:$0xff] %vm53, %v64
    // Predicated region
    $region22: #{tpu_custom_call.1} parent=1 // pred_check
      _
    $region23: #{tpu_custom_call.1} parent=1 // pred_check_branch
      %67 = sbr.rel (0) target = $region25
    $region24: #{tpu_custom_call.1} parent=1 // pred_region
      %s69 = ssub.s32 128, 128
      %70 = vsyncadd [#allocation5], %s69
      %s72 = sshll.u32 [#allocation8], 4
      %s73 = int_to_ptr.vmem [resolvable:$true] %s72
      %75 = dma.vmem_to_hbm [thread:$0]  %s73, 128, %s3, [#allocation5]
    $region25: #{tpu_custom_call.1} parent=1 // pred_fallthru
      _
    // Predicated region
    $region26: #{tpu_custom_call.1} parent=1 // pred_check
      _
    $region27: #{tpu_custom_call.1} parent=1 // pred_check_branch
      %77 = sbr.rel (0) target = $region29
    $region28: #{tpu_custom_call.1} parent=1 // pred_region
      %78 = dma.done [#allocation5], 128
    $region29: #{tpu_custom_call.1} parent=1 // pred_fallthru
      _
    %79 = vsyncpa [#allocation4], 1
    %80 = vsyncpa [#allocation7], 1
    %81 = vsyncpa [#allocation5], 1

</llo_original>
